<compile_context>
chip_gen: v5e
topology: v5e:2x2
jax: 0.10.0
libtpu: 0.0.40
codegen_flags: <defaults>
</compile_context>

<pallas_src>
import functools

import jax
import jax.numpy as jnp
from jax.experimental import pallas as pl
from jax.experimental.pallas import tpu as pltpu

EPS = 1e-5


def _round_up(x, m):
    return ((x + m - 1) // m) * m


def _postnorm_kernel(x_ref, w_ref, c_ref, o_ref, *, d_true, d_pad, mxu_dtype):
    # x_ref: (TILE_N, D_pad); w_ref: (D_pad, D_pad) already transposed so x @ w == Linear(x)
    x = x_ref[...]

    # fn(x) = Linear(dim, dim): MXU matmul (bf16 path for f32 inputs), f32 accumulation.
    y = jnp.dot(x.astype(mxu_dtype), w_ref[...].astype(mxu_dtype),
                preferred_element_type=jnp.float32)

    c = c_ref[...]                                  # (8, D_pad) f32: row0=bias, row1=gamma, row2=beta
    bias, gamma, beta = c[0:1, :], c[1:2, :], c[2:3, :]

    # PostNorm residual: z = fn(x) + x     (f32; padded lanes of z are exactly 0)
    z = y + bias + x.astype(jnp.float32)

    # LayerNorm over the true feature width (biased variance, eps inside rsqrt, like nn.LayerNorm).
    if d_true == d_pad:
        mean = jnp.mean(z, axis=-1, keepdims=True)
        cen = z - mean
        var = jnp.mean(cen * cen, axis=-1, keepdims=True)
    else:
        inv_d = jnp.float32(1.0 / d_true)
        mean = jnp.sum(z, axis=-1, keepdims=True) * inv_d
        lane = jax.lax.broadcasted_iota(jnp.int32, (1, d_pad), 1)
        mask = (lane < d_true).astype(jnp.float32)
        cen = (z - mean) * mask                     # zero padded lanes before the variance
        var = jnp.sum(cen * cen, axis=-1, keepdims=True) * inv_d

    zn = cen * jax.lax.rsqrt(var + EPS)
    o_ref[...] = (zn * gamma + beta).astype(o_ref.dtype)


def _vmem_cap_bytes():
    # Per-generation VMEM (v5e/v6e: 128 MiB, v7x: 64 MiB) with ~20% headroom for
    # compiler scratch; fall back to the smallest known capacity if the query fails.
    try:
        info = pltpu.get_tpu_info()
        cap = int(getattr(info, "vmem_capacity_bytes", 0)) or (64 << 20)
    except Exception:
        cap = 64 << 20
    return max(16 << 20, (cap * 4) // 5)


def _footprint_bytes(tile, d_pad, x_item, out_item, w_item, single_buffer_consts):
    n_const_buf = 1 if single_buffer_consts else 2
    w_bytes = n_const_buf * d_pad * d_pad * w_item       # resident weight block(s)
    c_bytes = n_const_buf * 8 * d_pad * 4                # packed bias/gamma/beta
    x_bytes = 2 * tile * d_pad * x_item                  # double-buffered input tiles
    o_bytes = 2 * tile * d_pad * out_item                # double-buffered output tiles
    tmp_bytes = 4 * tile * d_pad * 4                     # f32 intermediates (y/z/cen/zn)
    return w_bytes + c_bytes + x_bytes + o_bytes + tmp_bytes + (2 << 20)


def _make_call(n_pad, d_true, d_pad, tile, out_dtype, mxu_dtype,
               vmem_limit, cost, single_buffer_consts):
    # Grid-invariant operands: constant index_map, so one buffer suffices.
    const_kwargs = dict(pipeline_mode=pl.Buffered(1)) if single_buffer_consts else {}

    in_specs = [
        pl.BlockSpec((tile, d_pad), lambda i: (i, 0)),                   # x rows (pipelined)
        pl.BlockSpec((d_pad, d_pad), lambda i: (0, 0), **const_kwargs),  # weight (resident)
        pl.BlockSpec((8, d_pad), lambda i: (0, 0), **const_kwargs),      # packed bias/gamma/beta
    ]
    out_specs = pl.BlockSpec((tile, d_pad), lambda i: (i, 0))

    kernel = functools.partial(_postnorm_kernel, d_true=d_true, d_pad=d_pad,
                               mxu_dtype=mxu_dtype)
    return pl.pallas_call(
        kernel,
        out_shape=jax.ShapeDtypeStruct((n_pad, d_pad), out_dtype),
        grid_spec=pltpu.PrefetchScalarGridSpec(
            num_scalar_prefetch=0,
            grid=(n_pad // tile,),
            in_specs=in_specs,
            out_specs=out_specs,
        ),
        compiler_params=pltpu.CompilerParams(
            dimension_semantics=("parallel",),
            vmem_limit_bytes=vmem_limit,
        ),
        cost_estimate=cost,
    )


def postnorm(x, w_t, b, gamma, beta, *, tile_n=512):
    """PostNorm with fn = Linear: LayerNorm(x @ w_t + b + x).

    x: (B, S, D).  w_t: (D, D) = Linear.weight.T.  b/gamma/beta: (D,)."""
    B, S, D = x.shape
    N = B * S
    out_dtype = x.dtype

    # bf16 MXU path for f32 inputs (f32 accumulation; the LayerNorm washes out the rounding).
    mxu_dtype = jnp.bfloat16 if x.dtype == jnp.float32 else x.dtype

    # Lane-dense feature dim: pad D up to a multiple of 128.
    D_pad = max(128, _round_up(D, 128))

    # Row tile: multiple of 128, up to tile_n; keep >= 2 grid steps when the problem
    # is big enough so both v7x TensorCores get work (no effect on v5e/v6e).
    N128 = _round_up(N, 128)
    tile = max(128, (min(_round_up(tile_n, 128), N128) // 128) * 128)
    if N128 // tile < 2 and N128 >= 256:
        tile = max(128, ((N128 // 2) // 128) * 128)

    x_item = jnp.dtype(x.dtype).itemsize
    out_item = jnp.dtype(out_dtype).itemsize
    w_item = jnp.dtype(mxu_dtype).itemsize
    cap = _vmem_cap_bytes()
    # Shrink the row tile if the footprint (incl. f32 temporaries) would not fit under the cap.
    while tile > 128 and _footprint_bytes(tile, D_pad, x_item, out_item, w_item, True) > cap:
        tile = max(128, ((tile // 2) // 128) * 128)

    N_pad = _round_up(N, tile)

    # Pad / pack operands (padded rows/lanes are zero and sliced off after the call).
    x2 = jnp.pad(x.reshape(N, D), ((0, N_pad - N), (0, D_pad - D)))
    w2 = jnp.pad(w_t, ((0, D_pad - D), (0, D_pad - D))).astype(mxu_dtype)
    consts = jnp.zeros((8, D_pad), jnp.float32)
    consts = consts.at[0, :D].set(b.astype(jnp.float32))
    consts = consts.at[1, :D].set(gamma.astype(jnp.float32))
    consts = consts.at[2, :D].set(beta.astype(jnp.float32))

    cost = pl.CostEstimate(
        flops=2 * N_pad * D_pad * D_pad + 10 * N_pad * D_pad,
        bytes_accessed=N_pad * D_pad * (x_item + out_item)
        + D_pad * D_pad * w_item + 8 * D_pad * 4,
        transcendentals=N_pad,
    )

    def run(single_buffer_consts):
        needed = _footprint_bytes(tile, D_pad, x_item, out_item, w_item,
                                  single_buffer_consts)
        vmem_limit = int(min(max(needed * 5 // 4, 32 << 20), cap))
        call = _make_call(N_pad, D, D_pad, tile, out_dtype, mxu_dtype,
                          vmem_limit, cost, single_buffer_consts)
        return call(x2, w2, consts)

    try:
        out = run(True)
    except Exception as e:
        # Narrow fallback: only if this jax/Mosaic version rejects Buffered(1)
        # constant specs; any unrelated error is re-raised.
        msg = str(e).lower()
        if "buffer" not in msg and "pipeline_mode" not in msg:
            raise
        out = run(False)

    return out[:N, :D].reshape(B, S, D)


def postnorm_ref(x, w_t, b, gamma, beta):
    y = jnp.einsum("bsd,de->bse", x.astype(jnp.float32), w_t.astype(jnp.float32)) + b
    z = y + x.astype(jnp.float32)
    mean = jnp.mean(z, axis=-1, keepdims=True)
    var = jnp.mean((z - mean) ** 2, axis=-1, keepdims=True)
    zn = (z - mean) * jax.lax.rsqrt(var + EPS)
    return (zn * gamma + beta).astype(x.dtype)


if __name__ == "__main__":
    key = jax.random.PRNGKey(0)
    B, S, D = 2, 8, 32  # batch=2, seq=8, hidden dim=32

    kx, kw, kb = jax.random.split(key, 3)
    x = jax.random.normal(kx, (B, S, D), dtype=jnp.float32)

    # Deterministic parameter init (synthetic; emulates nn.Linear + nn.LayerNorm init)
    bound = 1.0 / (D ** 0.5)
    w = jax.random.uniform(kw, (D, D), minval=-bound, maxval=bound, dtype=jnp.float32)
    b = jax.random.uniform(kb, (D,), minval=-bound, maxval=bound, dtype=jnp.float32)
    w_t = w.T  # pre-transpose so the kernel does x @ w_t == Linear(x)
    gamma = jnp.ones((D,), dtype=jnp.float32)   # LayerNorm default affine
    beta = jnp.zeros((D,), dtype=jnp.float32)

    out = jax.block_until_ready(postnorm(x, w_t, b, gamma, beta))
    ref = postnorm_ref(x, w_t, b, gamma, beta)

    assert out.shape == (B, S, D)
    # bf16 MXU path -> slightly looser tolerance than pure-f32 math.
    max_diff = float(jnp.max(jnp.abs(out - ref)))
    assert jnp.allclose(out, ref, atol=3e-2, rtol=3e-2), (
        "mismatch vs reference; max abs diff = %g" % max_diff)

    print("KERNEL_OK")
</pallas_src>

<mosaic_0001>
module attributes {stable_mosaic.version = 11 : i64} {
  func.func @_postnorm_kernel(%arg0: i32, %arg1: memref<128x128xf32, #tpu.memory_space<vmem>>, %arg2: memref<128x128xbf16, #tpu.memory_space<vmem>>, %arg3: memref<8x128xf32, #tpu.memory_space<vmem>>, %arg4: memref<128x128xf32, #tpu.memory_space<vmem>>) attributes {dimension_semantics = [#tpu.dimension_semantics<parallel>], iteration_bounds = array<i64: 1>, scalar_prefetch = 0 : i64, scratch_operands = 0 : i64, tpu.core_type = #tpu.core_type<tc>, window_params = [{transform_indices = @transform_0, window_bounds = array<i64: 128, 128>}, {pipeline_mode = #tpu.pipeline_mode<synchronous>, transform_indices = @transform_1, window_bounds = array<i64: 128, 128>}, {pipeline_mode = #tpu.pipeline_mode<synchronous>, transform_indices = @transform_2, window_bounds = array<i64: 8, 128>}, {transform_indices = @transform_3, window_bounds = array<i64: 128, 128>}]} {
    %c0 = arith.constant 0 : index
    %c0_0 = arith.constant 0 : index
    %0 = vector.load %arg1[%c0, %c0_0] : memref<128x128xf32, #tpu.memory_space<vmem>>, vector<128x128xf32>
    %1 = arith.truncf %0 : vector<128x128xf32> to vector<128x128xbf16>
    %c0_1 = arith.constant 0 : index
    %c0_2 = arith.constant 0 : index
    %2 = vector.load %arg2[%c0_1, %c0_2] : memref<128x128xbf16, #tpu.memory_space<vmem>>, vector<128x128xbf16>
    %cst = arith.constant dense<0.000000e+00> : vector<128x128xf32>
    %3 = tpu.matmul %1, %2, %cst {dimension_numbers = #tpu.dot_dimension_numbers<[1], [0], [0], [1], [0, 0, 1, 1], [], []>} : vector<128x128xbf16>, vector<128x128xbf16>, vector<128x128xf32> -> vector<128x128xf32>
    %c0_3 = arith.constant 0 : index
    %c0_4 = arith.constant 0 : index
    %4 = vector.load %arg3[%c0_3, %c0_4] : memref<8x128xf32, #tpu.memory_space<vmem>>, vector<8x128xf32>
    %5 = vector.extract_strided_slice %4 {offsets = [0, 0], sizes = [1, 128], strides = [1, 1]} : vector<8x128xf32> to vector<1x128xf32>
    %6 = vector.extract_strided_slice %4 {offsets = [1, 0], sizes = [1, 128], strides = [1, 1]} : vector<8x128xf32> to vector<1x128xf32>
    %7 = vector.extract_strided_slice %4 {offsets = [2, 0], sizes = [1, 128], strides = [1, 1]} : vector<8x128xf32> to vector<1x128xf32>
    %8 = vector.broadcast %5 : vector<1x128xf32> to vector<128x128xf32>
    %9 = arith.addf %3, %8 : vector<128x128xf32>
    %10 = arith.addf %9, %0 : vector<128x128xf32>
    %cst_5 = arith.constant dense<0.000000e+00> : vector<128xf32>
    %11 = vector.multi_reduction <add>, %10, %cst_5 [1] : vector<128x128xf32> to vector<128xf32>
    %12 = vector.shape_cast %11 : vector<128xf32> to vector<128x1xf32>
    %cst_6 = arith.constant 3.125000e-02 : f32
    %13 = vector.broadcast %cst_6 : f32 to vector<128x1xf32>
    %14 = arith.mulf %12, %13 : vector<128x1xf32>
    %15 = tpu.iota {dimensions = array<i32: 1>} : vector<1x128xi32>
    %c32_i32 = arith.constant 32 : i32
    %16 = vector.broadcast %c32_i32 : i32 to vector<1x128xi32>
    %17 = arith.cmpi slt, %15, %16 : vector<1x128xi32>
    %18 = arith.extui %17 : vector<1x128xi1> to vector<1x128xi32>
    %19 = arith.sitofp %18 : vector<1x128xi32> to vector<1x128xf32>
    %20 = vector.broadcast %14 : vector<128x1xf32> to vector<128x128xf32>
    %21 = arith.subf %10, %20 : vector<128x128xf32>
    %22 = vector.broadcast %19 : vector<1x128xf32> to vector<128x128xf32>
    %23 = arith.mulf %21, %22 : vector<128x128xf32>
    %24 = arith.mulf %23, %23 : vector<128x128xf32>
    %cst_7 = arith.constant dense<0.000000e+00> : vector<128xf32>
    %25 = vector.multi_reduction <add>, %24, %cst_7 [1] : vector<128x128xf32> to vector<128xf32>
    %26 = vector.shape_cast %25 : vector<128xf32> to vector<128x1xf32>
    %cst_8 = arith.constant 3.125000e-02 : f32
    %27 = vector.broadcast %cst_8 : f32 to vector<128x1xf32>
    %28 = arith.mulf %26, %27 : vector<128x1xf32>
    %cst_9 = arith.constant 9.99999974E-6 : f32
    %29 = vector.broadcast %cst_9 : f32 to vector<128x1xf32>
    %30 = arith.addf %28, %29 : vector<128x1xf32>
    %31 = math.rsqrt %30 : vector<128x1xf32>
    %32 = vector.broadcast %31 : vector<128x1xf32> to vector<128x128xf32>
    %33 = arith.mulf %23, %32 : vector<128x128xf32>
    %34 = vector.broadcast %6 : vector<1x128xf32> to vector<128x128xf32>
    %35 = arith.mulf %33, %34 : vector<128x128xf32>
    %36 = vector.broadcast %7 : vector<1x128xf32> to vector<128x128xf32>
    %37 = arith.addf %35, %36 : vector<128x128xf32>
    %c0_10 = arith.constant 0 : index
    %c0_11 = arith.constant 0 : index
    %38 = vector.load %arg4[%c0_10, %c0_11] : memref<128x128xf32, #tpu.memory_space<vmem>>, vector<128x128xf32>
    tpu.vector_store %arg4[%c0_10, %c0_11], %37 {strides = array<i32>} : memref<128x128xf32, #tpu.memory_space<vmem>>, vector<128x128xf32>,
    return
  }
  func.func @transform_0(%arg0: i32) -> (i32, i32) {
    %c0_i32 = arith.constant 0 : i32
    %c0_i32_0 = arith.constant 0 : i32
    return %arg0, %c0_i32 : i32, i32
  }
  func.func @transform_1(%arg0: i32) -> (i32, i32) {
    %c0_i32 = arith.constant 0 : i32
    %c0_i32_0 = arith.constant 0 : i32
    %c0_i32_1 = arith.constant 0 : i32
    return %c0_i32, %c0_i32_0 : i32, i32
  }
  func.func @transform_2(%arg0: i32) -> (i32, i32) {
    %c0_i32 = arith.constant 0 : i32
    %c0_i32_0 = arith.constant 0 : i32
    %c0_i32_1 = arith.constant 0 : i32
    return %c0_i32, %c0_i32_0 : i32, i32
  }
  func.func @transform_3(%arg0: i32) -> (i32, i32) {
    %c0_i32 = arith.constant 0 : i32
    %c0_i32_0 = arith.constant 0 : i32
    return %arg0, %c0_i32 : i32, i32
  }
}

</mosaic_0001>

<llo_original>
// kernel: tpu_custom_call.1
$region0: #{tpu_custom_call.1}
  #allocation0 [shape = 'u32[]', space=smem, size = 0x4, offset = 0x4, fixed_abs, tag = 'smem constant byte address 0x4 - core index']
  #allocation1 [shape = 'u32[72,128]{1,0:T(1,128)}', space=vmem, size = 0x9000, scoped, tag = 'internal scratch']
  %s0 = inlined_call_operand.hbm [shape: f32[128,128], index: 0, kind: input, shape index: {}]
  %s1 = inlined_call_operand.hbm [shape: bf16[128,128], index: 1, kind: input, shape index: {}]
  %s2 = inlined_call_operand.hbm [shape: f32[8,128], index: 2, kind: input, shape index: {}]
  %s3 = inlined_call_operand.hbm [shape: f32[128,128], index: 3, kind: output, shape index: {}]
  %s4 = sld [smem:[#allocation0]]
  $region34: #{tpu_custom_call.1} parent=0
    _
  %s6 = ssub.s32 1, %s4
  %s7 = scalar_select 0, %s6, %s4
  $region1: #{tpu_custom_call.1} parent=0
    #allocation2 [shape = 'u8[65536]{0}', space=vmem, size = 0x10000, scoped, tag = 'input window, operand 0, single buffered']
    #allocation3 [shape = 's32[1]{0}', space=sflag, size = 0x4, scoped, tag = 'scoped memory for tpu_custom_call.1']
    #allocation4 [shape = 's32[1]{0}', space=sflag, size = 0x4, scoped, tag = 'scoped memory for tpu_custom_call.1']
    #allocation5 [shape = 'u8[32768]{0}', space=vmem, size = 0x8000, scoped, tag = 'input window, operand 1, single buffered']
    #allocation6 [shape = 's32[1]{0}', space=sflag, size = 0x4, scoped, tag = 'scoped memory for tpu_custom_call.1']
    #allocation7 [shape = 'u8[4096]{0}', space=vmem, size = 0x1000, scoped, tag = 'input window, operand 2, single buffered']
    #allocation8 [shape = 'u8[65536]{0}', space=vmem, size = 0x10000, scoped, tag = 'output window, operand 0, single buffered']
    %8 = vsyncpa [#allocation3], 0
    %9 = vsyncpa [#allocation6], 0
    %10 = vsyncpa [#allocation4], 0
    // Predicated region
    $region2: #{tpu_custom_call.1} parent=1 // pred_check
      _
    $region3: #{tpu_custom_call.1} parent=1 // pred_check_branch
      %12 = sbr.rel (0) target = $region5
    $region4: #{tpu_custom_call.1} parent=1 // pred_region
      %14 = vsyncadd [#allocation3], 0
      %s15 = sshll.u32 %s0, 4
      %s16 = int_to_ptr.hbm [resolvable:$true] %s15
      %s17 = sshll.u32 [#allocation2], 4
      %s18 = int_to_ptr.vmem [resolvable:$true] %s17
      %23 = dma.hbm_to_vmem [thread:$0]  %s16, 2048, %s18, [#allocation3], 128, 128, 8
    $region5: #{tpu_custom_call.1} parent=1 // pred_fallthru
      _
    // Predicated region
    $region6: #{tpu_custom_call.1} parent=1 // pred_check
      _
    $region7: #{tpu_custom_call.1} parent=1 // pred_check_branch
      %25 = sbr.rel (0) target = $region9
    $region8: #{tpu_custom_call.1} parent=1 // pred_region
      %27 = vsyncadd [#allocation6], 0
      %s28 = sshll.u32 %s1, 4
      %s29 = int_to_ptr.hbm [resolvable:$true] %s28
      %s30 = sshll.u32 [#allocation5], 4
      %s31 = int_to_ptr.vmem [resolvable:$true] %s30
      %36 = dma.hbm_to_vmem [thread:$0]  %s29, 1024, %s31, [#allocation6], 64, 64, 4
    $region9: #{tpu_custom_call.1} parent=1 // pred_fallthru
      _
    // Predicated region
    $region10: #{tpu_custom_call.1} parent=1 // pred_check
      _
    $region11: #{tpu_custom_call.1} parent=1 // pred_check_branch
      %38 = sbr.rel (0) target = $region13
    $region12: #{tpu_custom_call.1} parent=1 // pred_region
      %40 = vsyncadd [#allocation6], 0
      %s42 = sshll.u32 %s2, 4
      %s43 = int_to_ptr.hbm [resolvable:$true] %s42
      %s44 = sshll.u32 [#allocation7], 4
      %s45 = int_to_ptr.vmem [resolvable:$true] %s44
      %47 = dma.hbm_to_vmem [thread:$0]  %s43, 128, %s45, [#allocation6]
    $region13: #{tpu_custom_call.1} parent=1 // pred_fallthru
      _
    // Predicated region
    $region14: #{tpu_custom_call.1} parent=1 // pred_check
      _
    $region15: #{tpu_custom_call.1} parent=1 // pred_check_branch
      %49 = sbr.rel (0) target = $region17
    $region16: #{tpu_custom_call.1} parent=1 // pred_region
      %51 = dma.done [#allocation3], 2048
    $region17: #{tpu_custom_call.1} parent=1 // pred_fallthru
      _
    // Predicated region
    $region18: #{tpu_custom_call.1} parent=1 // pred_check
      _
    $region19: #{tpu_custom_call.1} parent=1 // pred_check_branch
      %53 = sbr.rel (0) target = $region21
    $region20: #{tpu_custom_call.1} parent=1 // pred_region
      %55 = dma.done [#allocation6], 1024
    $region21: #{tpu_custom_call.1} parent=1 // pred_fallthru
      _
    // Predicated region
    $region22: #{tpu_custom_call.1} parent=1 // pred_check
      _
    $region23: #{tpu_custom_call.1} parent=1 // pred_check_branch
      %57 = sbr.rel (0) target = $region25
    $region24: #{tpu_custom_call.1} parent=1 // pred_region
      %59 = dma.done [#allocation6], 128
    $region25: #{tpu_custom_call.1} parent=1 // pred_fallthru
      _
    %v60 = vld [vmem:[#allocation2] sm:$0xff]
    %v61 = vld [vmem:[#allocation2 + $0x8] sm:$0xff]
    %v62 = vld [vmem:[#allocation2 + $0x10] sm:$0xff]
    %v63 = vld [vmem:[#allocation2 + $0x18] sm:$0xff]
    %v64 = vld [vmem:[#allocation2 + $0x20] sm:$0xff]
    %v65 = vld [vmem:[#allocation2 + $0x28] sm:$0xff]
    %v66 = vld [vmem:[#allocation2 + $0x30] sm:$0xff]
    %v67 = vld [vmem:[#allocation2 + $0x38] sm:$0xff]
    %v68 = vld [vmem:[#allocation2 + $0x40] sm:$0xff]
    %v69 = vld [vmem:[#allocation2 + $0x48] sm:$0xff]
    %v70 = vld [vmem:[#allocation2 + $0x50] sm:$0xff]
    %v71 = vld [vmem:[#allocation2 + $0x58] sm:$0xff]
    %v72 = vld [vmem:[#allocation2 + $0x60] sm:$0xff]
    %v73 = vld [vmem:[#allocation2 + $0x68] sm:$0xff]
    %v74 = vld [vmem:[#allocation2 + $0x70] sm:$0xff]
    %v75 = vld [vmem:[#allocation2 + $0x78] sm:$0xff]
    %v76 = vpack.c.bf16 %v61, %v60
    %v77 = vpack.c.bf16 %v63, %v62
    %v78 = vpack.c.bf16 %v65, %v64
    %v79 = vpack.c.bf16 %v67, %v66
    %v80 = vpack.c.bf16 %v69, %v68
    %v81 = vpack.c.bf16 %v71, %v70
    %v82 = vpack.c.bf16 %v73, %v72
    %v83 = vpack.c.bf16 %v75, %v74
    %v84 = vld [vmem:[#allocation5] sm:$0xf]
    %v85 = vld [vmem:[#allocation5 + $0x4] sm:$0xf]
    %v86 = vld [vmem:[#allocation5 + $0x8] sm:$0xf]
    %v87 = vld [vmem:[#allocation5 + $0xc] sm:$0xf]
    %v88 = vld [vmem:[#allocation5 + $0x10] sm:$0xf]
    %v89 = vld [vmem:[#allocation5 + $0x14] sm:$0xf]
    %v90 = vld [vmem:[#allocation5 + $0x18] sm:$0xf]
    %v91 = vld [vmem:[#allocation5 + $0x1c] sm:$0xf]
    %v92 = vld [vmem:[#allocation5 + $0x20] sm:$0xf]
    %v93 = vld [vmem:[#allocation5 + $0x24] sm:$0xf]
    %v94 = vld [vmem:[#allocation5 + $0x28] sm:$0xf]
    %v95 = vld [vmem:[#allocation5 + $0x2c] sm:$0xf]
    %v96 = vld [vmem:[#allocation5 + $0x30] sm:$0xf]
    %v97 = vld [vmem:[#allocation5 + $0x34] sm:$0xf]
    %v98 = vld [vmem:[#allocation5 + $0x38] sm:$0xf]
    %v99 = vld [vmem:[#allocation5 + $0x3c] sm:$0xf]
    %v100 = vld [vmem:[#allocation7] sm:$0xff]
    %v101 = vperm.slane %v100, 0
    %v118 = vunpack.c.l.b16 %v84
    %v119 = vunpack.c.l.b16 %v85
    %v120 = vunpack.c.l.b16 %v86
    %v121 = vunpack.c.l.b16 %v87
    %v122 = vunpack.c.l.b16 %v88
    %v123 = vunpack.c.l.b16 %v89
    %v124 = vunpack.c.l.b16 %v90
    %v125 = vunpack.c.l.b16 %v91
    %v126 = vunpack.c.l.b16 %v92
    %v127 = vunpack.c.l.b16 %v93
    %v128 = vunpack.c.l.b16 %v94
    %v129 = vunpack.c.l.b16 %v95
    %v130 = vunpack.c.l.b16 %v96
    %v131 = vunpack.c.l.b16 %v97
    %v132 = vunpack.c.l.b16 %v98
    %v133 = vunpack.c.l.b16 %v99
    %v134 = vpack.c.b16 %v119, %v118
    %v135 = vpack.c.b16 %v121, %v120
    %v136 = vpack.c.b16 %v123, %v122
    %v137 = vpack.c.b16 %v125, %v124
    %v138 = vpack.c.b16 %v127, %v126
    %v139 = vpack.c.b16 %v129, %v128
    %v140 = vpack.c.b16 %v131, %v130
    %v141 = vpack.c.b16 %v133, %v132
    %150 = vmatpush.bf16.msra.mxu0 %v141
    %151 = vmatpush.bf16.msra.mxu0 %v140
    %152 = vmatpush.bf16.msra.mxu0 %v139
    %153 = vmatpush.bf16.msra.mxu0 %v138
    %154 = vmatpush.bf16.msra.mxu0 %v137
    %155 = vmatpush.bf16.msra.mxu0 %v136
    %156 = vmatpush.bf16.msra.mxu0 %v135
    %157 = vmatpush.bf16.msra.mxu0 %v134
    %158 = vmatmul.bf16.gmra.mxu0 %v76
    %v159 = vpop.f32.mrf.mxu0
    %v160 = vadd.f32 %v101, %v159
    %v161 = vpop.f32.mrf.mxu0
    %v162 = vadd.f32 %v101, %v161
    %163 = vmatmul.bf16.gmra.mxu0 %v77
    %v164 = vpop.f32.mrf.mxu0
    %v165 = vadd.f32 %v101, %v164
    %v166 = vpop.f32.mrf.mxu0
    %v167 = vadd.f32 %v101, %v166
    %168 = vmatmul.bf16.gmra.mxu0 %v78
    %v169 = vpop.f32.mrf.mxu0
    %v170 = vadd.f32 %v101, %v169
    %v171 = vpop.f32.mrf.mxu0
    %v172 = vadd.f32 %v101, %v171
    %173 = vmatmul.bf16.gmra.mxu0 %v79
    %v174 = vpop.f32.mrf.mxu0
    %v175 = vadd.f32 %v101, %v174
    %v176 = vpop.f32.mrf.mxu0
    %v177 = vadd.f32 %v101, %v176
    %178 = vmatmul.bf16.gmra.mxu0 %v80
    %v179 = vpop.f32.mrf.mxu0
    %v180 = vadd.f32 %v101, %v179
    %v181 = vpop.f32.mrf.mxu0
    %v182 = vadd.f32 %v101, %v181
    %183 = vmatmul.bf16.gmra.mxu0 %v81
    %v184 = vpop.f32.mrf.mxu0
    %v185 = vadd.f32 %v101, %v184
    %v186 = vpop.f32.mrf.mxu0
    %v187 = vadd.f32 %v101, %v186
    %188 = vmatmul.bf16.gmra.mxu0 %v82
    %v189 = vpop.f32.mrf.mxu0
    %v190 = vadd.f32 %v101, %v189
    %v191 = vpop.f32.mrf.mxu0
    %v192 = vadd.f32 %v101, %v191
    %193 = vmatmul.bf16.gmra.mxu0 %v83
    %v194 = vpop.f32.mrf.mxu0
    %v195 = vadd.f32 %v101, %v194
    %v196 = vpop.f32.mrf.mxu0
    %v197 = vadd.f32 %v101, %v196
    %198 = vdwg.mxu0
    %v199 = vadd.f32 %v160, %v60
    %v200 = vadd.f32 %v162, %v61
    %v201 = vadd.f32 %v165, %v62
    %v202 = vadd.f32 %v167, %v63
    %v203 = vadd.f32 %v170, %v64
    %v204 = vadd.f32 %v172, %v65
    %v205 = vadd.f32 %v175, %v66
    %v206 = vadd.f32 %v177, %v67
    %v207 = vadd.f32 %v180, %v68
    %v208 = vadd.f32 %v182, %v69
    %v209 = vadd.f32 %v185, %v70
    %v210 = vadd.f32 %v187, %v71
    %v211 = vadd.f32 %v190, %v72
    %v212 = vadd.f32 %v192, %v73
    %v213 = vadd.f32 %v195, %v74
    %v214 = vadd.f32 %v197, %v75
    %215 = vadd.xlane.f32.xlu0 %v199
    %v216 = vpop.xlane.xlu0 %215
    %217 = vadd.xlane.f32.xlu0 %v200
    %v218 = vpop.xlane.xlu0 %217
    %219 = vadd.xlane.f32.xlu0 %v201
    %v220 = vpop.xlane.xlu0 %219
    %221 = vadd.xlane.f32.xlu0 %v202
    %v222 = vpop.xlane.xlu0 %221
    %223 = vadd.xlane.f32.xlu0 %v203
    %v224 = vpop.xlane.xlu0 %223
    %225 = vadd.xlane.f32.xlu0 %v204
    %v226 = vpop.xlane.xlu0 %225
    %227 = vadd.xlane.f32.xlu0 %v205
    %v228 = vpop.xlane.xlu0 %227
    %229 = vadd.xlane.f32.xlu0 %v206
    %v230 = vpop.xlane.xlu0 %229
    %231 = vadd.xlane.f32.xlu0 %v207
    %v232 = vpop.xlane.xlu0 %231
    %233 = vadd.xlane.f32.xlu0 %v208
    %v234 = vpop.xlane.xlu0 %233
    %235 = vadd.xlane.f32.xlu0 %v209
    %v236 = vpop.xlane.xlu0 %235
    %237 = vadd.xlane.f32.xlu0 %v210
    %v238 = vpop.xlane.xlu0 %237
    %239 = vadd.xlane.f32.xlu0 %v211
    %v240 = vpop.xlane.xlu0 %239
    %241 = vadd.xlane.f32.xlu0 %v212
    %v242 = vpop.xlane.xlu0 %241
    %243 = vadd.xlane.f32.xlu0 %v213
    %v244 = vpop.xlane.xlu0 %243
    %245 = vadd.xlane.f32.xlu0 %v214
    %v246 = vpop.xlane.xlu0 %245
    %v247 = vmul.f32 %v216, 0.03125
    %v248 = vmul.f32 %v218, 0.03125
    %v249 = vmul.f32 %v220, 0.03125
    %v250 = vmul.f32 %v222, 0.03125
    %v251 = vmul.f32 %v224, 0.03125
    %v252 = vmul.f32 %v226, 0.03125
    %v253 = vmul.f32 %v228, 0.03125
    %v254 = vmul.f32 %v230, 0.03125
    %v255 = vmul.f32 %v232, 0.03125
    %v256 = vmul.f32 %v234, 0.03125
    %v257 = vmul.f32 %v236, 0.03125
    %v258 = vmul.f32 %v238, 0.03125
    %v259 = vmul.f32 %v240, 0.03125
    %v260 = vmul.f32 %v242, 0.03125
    %v261 = vmul.f32 %v244, 0.03125
    %v262 = vmul.f32 %v246, 0.03125
    %v263 = vlaneseq
    %v264 = vand.u32 %v263, 127
    %vm265 = vcmp.lt.s32.totalorder %v264, 32
    %v266 = vsel %vm265, 1, 0
    %v267 = vcvt.s32.f32 %v266
    %v268 = vsub.f32 %v199, %v247
    %v269 = vsub.f32 %v200, %v248
    %v270 = vsub.f32 %v201, %v249
    %v271 = vsub.f32 %v202, %v250
    %v272 = vsub.f32 %v203, %v251
    %v273 = vsub.f32 %v204, %v252
    %v274 = vsub.f32 %v205, %v253
    %v275 = vsub.f32 %v206, %v254
    %v276 = vsub.f32 %v207, %v255
    %v277 = vsub.f32 %v208, %v256
    %v278 = vsub.f32 %v209, %v257
    %v279 = vsub.f32 %v210, %v258
    %v280 = vsub.f32 %v211, %v259
    %v281 = vsub.f32 %v212, %v260
    %v282 = vsub.f32 %v213, %v261
    %v283 = vsub.f32 %v214, %v262
    %v284 = vmul.f32 %v268, %v267
    %v285 = vmul.f32 %v269, %v267
    %v286 = vmul.f32 %v270, %v267
    %v287 = vmul.f32 %v271, %v267
    %v288 = vmul.f32 %v272, %v267
    %v289 = vmul.f32 %v273, %v267
    %v290 = vmul.f32 %v274, %v267
    %v291 = vmul.f32 %v275, %v267
    %v292 = vmul.f32 %v276, %v267
    %v293 = vmul.f32 %v277, %v267
    %v294 = vmul.f32 %v278, %v267
    %v295 = vmul.f32 %v279, %v267
    %v296 = vmul.f32 %v280, %v267
    %v297 = vmul.f32 %v281, %v267
    %v298 = vmul.f32 %v282, %v267
    %v299 = vmul.f32 %v283, %v267
    %v300 = vmul.f32 %v284, %v284
    %v301 = vmul.f32 %v285, %v285
    %v302 = vmul.f32 %v286, %v286
    %v303 = vmul.f32 %v287, %v287
    %v304 = vmul.f32 %v288, %v288
    %v305 = vmul.f32 %v289, %v289
    %v306 = vmul.f32 %v290, %v290
    %v307 = vmul.f32 %v291, %v291
    %v308 = vmul.f32 %v292, %v292
    %v309 = vmul.f32 %v293, %v293
    %v310 = vmul.f32 %v294, %v294
    %v311 = vmul.f32 %v295, %v295
    %v312 = vmul.f32 %v296, %v296
    %v313 = vmul.f32 %v297, %v297
    %v314 = vmul.f32 %v298, %v298
    %v315 = vmul.f32 %v299, %v299
    %316 = vadd.xlane.f32.xlu0 %v300
    %v317 = vpop.xlane.xlu0 %316
    %318 = vadd.xlane.f32.xlu0 %v301
    %v319 = vpop.xlane.xlu0 %318
    %320 = vadd.xlane.f32.xlu0 %v302
    %v321 = vpop.xlane.xlu0 %320
    %322 = vadd.xlane.f32.xlu0 %v303
    %v323 = vpop.xlane.xlu0 %322
    %324 = vadd.xlane.f32.xlu0 %v304
    %v325 = vpop.xlane.xlu0 %324
    %326 = vadd.xlane.f32.xlu0 %v305
    %v327 = vpop.xlane.xlu0 %326
    %328 = vadd.xlane.f32.xlu0 %v306
    %v329 = vpop.xlane.xlu0 %328
    %330 = vadd.xlane.f32.xlu0 %v307
    %v331 = vpop.xlane.xlu0 %330
    %332 = vadd.xlane.f32.xlu0 %v308
    %v333 = vpop.xlane.xlu0 %332
    %334 = vadd.xlane.f32.xlu0 %v309
    %v335 = vpop.xlane.xlu0 %334
    %336 = vadd.xlane.f32.xlu0 %v310
    %v337 = vpop.xlane.xlu0 %336
    %338 = vadd.xlane.f32.xlu0 %v311
    %v339 = vpop.xlane.xlu0 %338
    %340 = vadd.xlane.f32.xlu0 %v312
    %v341 = vpop.xlane.xlu0 %340
    %342 = vadd.xlane.f32.xlu0 %v313
    %v343 = vpop.xlane.xlu0 %342
    %344 = vadd.xlane.f32.xlu0 %v314
    %v345 = vpop.xlane.xlu0 %344
    %346 = vadd.xlane.f32.xlu0 %v315
    %v347 = vpop.xlane.xlu0 %346
    %v348 = vmul.f32 %v317, 0.03125
    %v349 = vmul.f32 %v319, 0.03125
    %v350 = vmul.f32 %v321, 0.03125
    %v351 = vmul.f32 %v323, 0.03125
    %v352 = vmul.f32 %v325, 0.03125
    %v353 = vmul.f32 %v327, 0.03125
    %v354 = vmul.f32 %v329, 0.03125
    %v355 = vmul.f32 %v331, 0.03125
    %v356 = vmul.f32 %v333, 0.03125
    %v357 = vmul.f32 %v335, 0.03125
    %v358 = vmul.f32 %v337, 0.03125
    %v359 = vmul.f32 %v339, 0.03125
    %v360 = vmul.f32 %v341, 0.03125
    %v361 = vmul.f32 %v343, 0.03125
    %v362 = vmul.f32 %v345, 0.03125
    %v363 = vmul.f32 %v347, 0.03125
    %v364 = vadd.f32 %v348, 1e-05
    %v365 = vadd.f32 %v349, 1e-05
    %v366 = vadd.f32 %v350, 1e-05
    %v367 = vadd.f32 %v351, 1e-05
    %v368 = vadd.f32 %v352, 1e-05
    %v369 = vadd.f32 %v353, 1e-05
    %v370 = vadd.f32 %v354, 1e-05
    %v371 = vadd.f32 %v355, 1e-05
    %v372 = vadd.f32 %v356, 1e-05
    %v373 = vadd.f32 %v357, 1e-05
    %v374 = vadd.f32 %v358, 1e-05
    %v375 = vadd.f32 %v359, 1e-05
    %v376 = vadd.f32 %v360, 1e-05
    %v377 = vadd.f32 %v361, 1e-05
    %v378 = vadd.f32 %v362, 1e-05
    %v379 = vadd.f32 %v363, 1e-05
    %v380 = vrsqrt.pop %v364
    %v381 = vmul.f32 %v380, %v364
    %v382 = vmul.f32 %v381, %v380
    %v383 = vmul.f32 0.5, %v382
    %v384 = vsub.f32 1.5, %v383
    %v385 = vmul.f32 %v380, %v384
    %vm386 = vweird.f32 %v364
    %vm387 = vweird.f32 %v380
    %vm388 = vmor %vm386, %vm387
    %v389 = vsel %vm388, %v380, %v385
    %v390 = vrsqrt.pop %v365
    %v391 = vmul.f32 %v390, %v365
    %v392 = vmul.f32 %v391, %v390
    %v393 = vmul.f32 0.5, %v392
    %v394 = vsub.f32 1.5, %v393
    %v395 = vmul.f32 %v390, %v394
    %vm396 = vweird.f32 %v365
    %vm397 = vweird.f32 %v390
    %vm398 = vmor %vm396, %vm397
    %v399 = vsel %vm398, %v390, %v395
    %v400 = vrsqrt.pop %v366
    %v401 = vmul.f32 %v400, %v366
    %v402 = vmul.f32 %v401, %v400
    %v403 = vmul.f32 0.5, %v402
    %v404 = vsub.f32 1.5, %v403
    %v405 = vmul.f32 %v400, %v404
    %vm406 = vweird.f32 %v366
    %vm407 = vweird.f32 %v400
    %vm408 = vmor %vm406, %vm407
    %v409 = vsel %vm408, %v400, %v405
    %v410 = vrsqrt.pop %v367
    %v411 = vmul.f32 %v410, %v367
    %v412 = vmul.f32 %v411, %v410
    %v413 = vmul.f32 0.5, %v412
    %v414 = vsub.f32 1.5, %v413
    %v415 = vmul.f32 %v410, %v414
    %vm416 = vweird.f32 %v367
    %vm417 = vweird.f32 %v410
    %vm418 = vmor %vm416, %vm417
    %v419 = vsel %vm418, %v410, %v415
    %v420 = vrsqrt.pop %v368
    %v421 = vmul.f32 %v420, %v368
    %v422 = vmul.f32 %v421, %v420
    %v423 = vmul.f32 0.5, %v422
    %v424 = vsub.f32 1.5, %v423
    %v425 = vmul.f32 %v420, %v424
    %vm426 = vweird.f32 %v368
    %vm427 = vweird.f32 %v420
    %vm428 = vmor %vm426, %vm427
    %v429 = vsel %vm428, %v420, %v425
    %v430 = vrsqrt.pop %v369
    %v431 = vmul.f32 %v430, %v369
    %v432 = vmul.f32 %v431, %v430
    %v433 = vmul.f32 0.5, %v432
    %v434 = vsub.f32 1.5, %v433
    %v435 = vmul.f32 %v430, %v434
    %vm436 = vweird.f32 %v369
    %vm437 = vweird.f32 %v430
    %vm438 = vmor %vm436, %vm437
    %v439 = vsel %vm438, %v430, %v435
    %v440 = vrsqrt.pop %v370
    %v441 = vmul.f32 %v440, %v370
    %v442 = vmul.f32 %v441, %v440
    %v443 = vmul.f32 0.5, %v442
    %v444 = vsub.f32 1.5, %v443
    %v445 = vmul.f32 %v440, %v444
    %vm446 = vweird.f32 %v370
    %vm447 = vweird.f32 %v440
    %vm448 = vmor %vm446, %vm447
    %v449 = vsel %vm448, %v440, %v445
    %v450 = vrsqrt.pop %v371
    %v451 = vmul.f32 %v450, %v371
    %v452 = vmul.f32 %v451, %v450
    %v453 = vmul.f32 0.5, %v452
    %v454 = vsub.f32 1.5, %v453
    %v455 = vmul.f32 %v450, %v454
    %vm456 = vweird.f32 %v371
    %vm457 = vweird.f32 %v450
    %vm458 = vmor %vm456, %vm457
    %v459 = vsel %vm458, %v450, %v455
    %v460 = vrsqrt.pop %v372
    %v461 = vmul.f32 %v460, %v372
    %v462 = vmul.f32 %v461, %v460
    %v463 = vmul.f32 0.5, %v462
    %v464 = vsub.f32 1.5, %v463
    %v465 = vmul.f32 %v460, %v464
    %vm466 = vweird.f32 %v372
    %vm467 = vweird.f32 %v460
    %vm468 = vmor %vm466, %vm467
    %v469 = vsel %vm468, %v460, %v465
    %v470 = vrsqrt.pop %v373
    %v471 = vmul.f32 %v470, %v373
    %v472 = vmul.f32 %v471, %v470
    %v473 = vmul.f32 0.5, %v472
    %v474 = vsub.f32 1.5, %v473
    %v475 = vmul.f32 %v470, %v474
    %vm476 = vweird.f32 %v373
    %vm477 = vweird.f32 %v470
    %vm478 = vmor %vm476, %vm477
    %v479 = vsel %vm478, %v470, %v475
    %v480 = vrsqrt.pop %v374
    %v481 = vmul.f32 %v480, %v374
    %v482 = vmul.f32 %v481, %v480
    %v483 = vmul.f32 0.5, %v482
    %v484 = vsub.f32 1.5, %v483
    %v485 = vmul.f32 %v480, %v484
    %vm486 = vweird.f32 %v374
    %vm487 = vweird.f32 %v480
    %vm488 = vmor %vm486, %vm487
    %v489 = vsel %vm488, %v480, %v485
    %v490 = vrsqrt.pop %v375
    %v491 = vmul.f32 %v490, %v375
    %v492 = vmul.f32 %v491, %v490
    %v493 = vmul.f32 0.5, %v492
    %v494 = vsub.f32 1.5, %v493
    %v495 = vmul.f32 %v490, %v494
    %vm496 = vweird.f32 %v375
    %vm497 = vweird.f32 %v490
    %vm498 = vmor %vm496, %vm497
    %v499 = vsel %vm498, %v490, %v495
    %v500 = vrsqrt.pop %v376
    %v501 = vmul.f32 %v500, %v376
    %v502 = vmul.f32 %v501, %v500
    %v503 = vmul.f32 0.5, %v502
    %v504 = vsub.f32 1.5, %v503
    %v505 = vmul.f32 %v500, %v504
    %vm506 = vweird.f32 %v376
    %vm507 = vweird.f32 %v500
    %vm508 = vmor %vm506, %vm507
    %v509 = vsel %vm508, %v500, %v505
    %v510 = vrsqrt.pop %v377
    %v511 = vmul.f32 %v510, %v377
    %v512 = vmul.f32 %v511, %v510
    %v513 = vmul.f32 0.5, %v512
    %v514 = vsub.f32 1.5, %v513
    %v515 = vmul.f32 %v510, %v514
    %vm516 = vweird.f32 %v377
    %vm517 = vweird.f32 %v510
    %vm518 = vmor %vm516, %vm517
    %v519 = vsel %vm518, %v510, %v515
    %v520 = vrsqrt.pop %v378
    %v521 = vmul.f32 %v520, %v378
    %v522 = vmul.f32 %v521, %v520
    %v523 = vmul.f32 0.5, %v522
    %v524 = vsub.f32 1.5, %v523
    %v525 = vmul.f32 %v520, %v524
    %vm526 = vweird.f32 %v378
    %vm527 = vweird.f32 %v520
    %vm528 = vmor %vm526, %vm527
    %v529 = vsel %vm528, %v520, %v525
    %v530 = vrsqrt.pop %v379
    %v531 = vmul.f32 %v530, %v379
    %v532 = vmul.f32 %v531, %v530
    %v533 = vmul.f32 0.5, %v532
    %v534 = vsub.f32 1.5, %v533
    %v535 = vmul.f32 %v530, %v534
    %vm536 = vweird.f32 %v379
    %vm537 = vweird.f32 %v530
    %vm538 = vmor %vm536, %vm537
    %v539 = vsel %vm538, %v530, %v535
    %v540 = vmul.f32 %v284, %v389
    %v541 = vmul.f32 %v285, %v399
    %v542 = vmul.f32 %v286, %v409
    %v543 = vmul.f32 %v287, %v419
    %v544 = vmul.f32 %v288, %v429
    %v545 = vmul.f32 %v289, %v439
    %v546 = vmul.f32 %v290, %v449
    %v547 = vmul.f32 %v291, %v459
    %v548 = vmul.f32 %v292, %v469
    %v549 = vmul.f32 %v293, %v479
    %v550 = vmul.f32 %v294, %v489
    %v551 = vmul.f32 %v295, %v499
    %v552 = vmul.f32 %v296, %v509
    %v553 = vmul.f32 %v297, %v519
    %v554 = vmul.f32 %v298, %v529
    %v555 = vmul.f32 %v299, %v539
    %v556 = vperm.slane %v100, 1
    %v557 = vmul.f32 %v540, %v556
    %v558 = vmul.f32 %v541, %v556
    %v559 = vmul.f32 %v542, %v556
    %v560 = vmul.f32 %v543, %v556
    %v561 = vmul.f32 %v544, %v556
    %v562 = vmul.f32 %v545, %v556
    %v563 = vmul.f32 %v546, %v556
    %v564 = vmul.f32 %v547, %v556
    %v565 = vmul.f32 %v548, %v556
    %v566 = vmul.f32 %v549, %v556
    %v567 = vmul.f32 %v550, %v556
    %v568 = vmul.f32 %v551, %v556
    %v569 = vmul.f32 %v552, %v556
    %v570 = vmul.f32 %v553, %v556
    %v571 = vmul.f32 %v554, %v556
    %v572 = vmul.f32 %v555, %v556
    %v573 = vperm.slane %v100, 2
    %v574 = vadd.f32 %v557, %v573
    %v575 = vadd.f32 %v558, %v573
    %v576 = vadd.f32 %v559, %v573
    %v577 = vadd.f32 %v560, %v573
    %v578 = vadd.f32 %v561, %v573
    %v579 = vadd.f32 %v562, %v573
    %v580 = vadd.f32 %v563, %v573
    %v581 = vadd.f32 %v564, %v573
    %v582 = vadd.f32 %v565, %v573
    %v583 = vadd.f32 %v566, %v573
    %v584 = vadd.f32 %v567, %v573
    %v585 = vadd.f32 %v568, %v573
    %v586 = vadd.f32 %v569, %v573
    %v587 = vadd.f32 %v570, %v573
    %v588 = vadd.f32 %v571, %v573
    %v589 = vadd.f32 %v572, %v573
    %590 = vst [vmem:[#allocation8] sm:$0xff] %v574
    %591 = vst [vmem:[#allocation8 + $0x8] sm:$0xff] %v575
    %592 = vst [vmem:[#allocation8 + $0x10] sm:$0xff] %v576
    %593 = vst [vmem:[#allocation8 + $0x18] sm:$0xff] %v577
    %594 = vst [vmem:[#allocation8 + $0x20] sm:$0xff] %v578
    %595 = vst [vmem:[#allocation8 + $0x28] sm:$0xff] %v579
    %596 = vst [vmem:[#allocation8 + $0x30] sm:$0xff] %v580
    %597 = vst [vmem:[#allocation8 + $0x38] sm:$0xff] %v581
    %598 = vst [vmem:[#allocation8 + $0x40] sm:$0xff] %v582
    %599 = vst [vmem:[#allocation8 + $0x48] sm:$0xff] %v583
    %600 = vst [vmem:[#allocation8 + $0x50] sm:$0xff] %v584
    %601 = vst [vmem:[#allocation8 + $0x58] sm:$0xff] %v585
    %602 = vst [vmem:[#allocation8 + $0x60] sm:$0xff] %v586
    %603 = vst [vmem:[#allocation8 + $0x68] sm:$0xff] %v587
    %604 = vst [vmem:[#allocation8 + $0x70] sm:$0xff] %v588
    %605 = vst [vmem:[#allocation8 + $0x78] sm:$0xff] %v589
    // Predicated region
    $region26: #{tpu_custom_call.1} parent=1 // pred_check
      _
    $region27: #{tpu_custom_call.1} parent=1 // pred_check_branch
      %607 = sbr.rel (0) target = $region29
    $region28: #{tpu_custom_call.1} parent=1 // pred_region
      %609 = vsyncadd [#allocation4], 0
      %s610 = sshll.u32 [#allocation8], 4
      %s611 = int_to_ptr.vmem [resolvable:$true] %s610
      %s612 = sshll.u32 %s3, 4
      %s613 = int_to_ptr.hbm [resolvable:$true] %s612
      %618 = dma.vmem_to_hbm [thread:$0]  %s611, 2048, %s613, [#allocation4], 128, 128, 8
    $region29: #{tpu_custom_call.1} parent=1 // pred_fallthru
      _
    // Predicated region
    $region30: #{tpu_custom_call.1} parent=1 // pred_check
      _
    $region31: #{tpu_custom_call.1} parent=1 // pred_check_branch
      %620 = sbr.rel (0) target = $region33
    $region32: #{tpu_custom_call.1} parent=1 // pred_region
      %622 = dma.done [#allocation4], 2048
    $region33: #{tpu_custom_call.1} parent=1 // pred_fallthru
      _
    %623 = vsyncpa [#allocation3], 1
    %624 = vsyncpa [#allocation6], 1
    %625 = vsyncpa [#allocation4], 1

</llo_original>
